<compile_context>
chip_gen: v6e
topology: v6e:2x2x1
jax: 0.10.0
libtpu: 0.0.40
codegen_flags: <defaults>
</compile_context>

<pallas_src>
import jax
import jax.numpy as jnp
from jax.experimental import pallas as pl
from jax.experimental.pallas import tpu as pltpu


# Output slab row indices: [lin1_col0, lin1_col1, lin2, relu, relu6].
_ROW_LIN1_0, _ROW_LIN1_1, _ROW_LIN2, _ROW_RELU, _ROW_RELU6 = range(5)
_N_ROWS = 5

_SUB = 8
_LANE = 128
_TILE_MIN = _SUB * _LANE          # 1024 batch elems = one full (8,128) f32 tile
_MAX_TB = 128 * 1024              # ~128K batch elems / grid step


def _hook_forward_kernel(x_ref, out_ref):
    """Sublane-dense, VPU-only kernel.

    x_ref  : (2, 8, TL) f32 -- feature index first, batch packed into (8, TL) tiles.
    out_ref: (5, 8, TL) f32 -- rows = [lin1_0, lin1_1, lin2, relu, relu6].
    """
    # Ones-initialized weights/biases from TestForHook.initialize() baked in:
    #   lin1_0 = lin1_1 = x0 + x1 + 1 ;  lin2 = 2*(x0 + x1) + 3.
    s = x_ref[0] + x_ref[1]                  # (8, TL)
    lin1 = s + 1.0
    lin2 = 2.0 * s + 3.0
    relu = jnp.maximum(lin2, 0.0)
    relu6 = jnp.minimum(relu, 6.0)           # relu already >= 0

    out_ref[_ROW_LIN1_0] = lin1
    out_ref[_ROW_LIN1_1] = lin1
    out_ref[_ROW_LIN2] = lin2
    out_ref[_ROW_RELU] = relu
    out_ref[_ROW_RELU6] = relu6


def test_for_hook_forward(x):
    """JAX wrapper reproducing TestForHook.forward.

    Args:
      x: float32 array of shape (B, 2).
    Returns:
      (relu_6, layers_in, layers_out) with
        layers_in  = (x, linear_1, linear_2)
        layers_out = (linear_1, linear_2, relu)
    """
    f32 = jnp.float32
    x = x.astype(f32)
    B = x.shape[0]

    # ---- batch tiling: full (8,128) granularity, >=2 grid steps when big ----
    b_unit = pl.cdiv(B, _TILE_MIN) * _TILE_MIN        # pad to 1024 granularity
    if b_unit <= _TILE_MIN:
        grid_n = 1
        b_pad = _TILE_MIN
    else:
        # >= 2 steps so both v7x TensorCores get work; tile capped near _MAX_TB;
        # padding granularity is grid_n * 1024, not a whole tile.
        grid_n = max(2, pl.cdiv(b_unit, _MAX_TB))
        step = grid_n * _TILE_MIN
        b_pad = pl.cdiv(b_unit, step) * step
    tb = b_pad // grid_n                              # batch elems per grid step
    tl = tb // _SUB                                   # lane columns per step (mult of 128)
    L = b_pad // _SUB                                 # total lane columns

    # Layout plumbing: (B,2) -> feature-major (2, b_pad) -> sublane-dense (2, 8, L).
    # The trailing reshape is contiguous (free); the transpose+pad and the slab
    # unpack below are the remaining wrapper-side HBM passes.
    # TODO(synk): callers that can keep a feature-major layout avoid this round trip.
    xt = jnp.pad(x.T, ((0, 0), (0, b_pad - B))).reshape(2, _SUB, L)

    slab = pl.pallas_call(
        _hook_forward_kernel,
        out_shape=jax.ShapeDtypeStruct((_N_ROWS, _SUB, L), f32),
        grid_spec=pltpu.PrefetchScalarGridSpec(
            num_scalar_prefetch=0,
            grid=(grid_n,),
            in_specs=[pl.BlockSpec((2, _SUB, tl), lambda i: (0, 0, i))],
            out_specs=pl.BlockSpec((_N_ROWS, _SUB, tl), lambda i: (0, 0, i)),
        ),
        compiler_params=pltpu.CompilerParams(
            dimension_semantics=("parallel",),
        ),
    )(xt)

    # Unpack the slab back to the PyTorch (batch, feature) layout.
    slab2 = slab.reshape(_N_ROWS, b_pad)
    lin1 = slab2[_ROW_LIN1_0:_ROW_LIN1_1 + 1, :B].T   # (B, 2)
    lin2 = slab2[_ROW_LIN2:_ROW_LIN2 + 1, :B].T       # (B, 1)
    relu = slab2[_ROW_RELU:_ROW_RELU + 1, :B].T       # (B, 1)
    relu6 = slab2[_ROW_RELU6:_ROW_RELU6 + 1, :B].T    # (B, 1)

    layers_in = (x, lin1, lin2)
    layers_out = (lin1, lin2, relu)
    return relu6, layers_in, layers_out


if __name__ == "__main__":
    key = jax.random.PRNGKey(0)

    def _ref(xv):
        lin1 = xv @ jnp.ones((2, 2), jnp.float32) + 1.0
        lin2 = lin1 @ jnp.ones((2, 1), jnp.float32) + 1.0
        relu = jnp.maximum(lin2, 0.0)
        relu6 = jnp.clip(relu, 0.0, 6.0)
        return lin1, lin2, relu, relu6

    ok = True
    # B=8 exercises the single-tile path; B=2500 exercises the >=2-step grid.
    for B in (8, 2500):
        x = 4.0 * jax.random.normal(jax.random.fold_in(key, B), (B, 2), dtype=jnp.float32)
        relu6, layers_in, layers_out = test_for_hook_forward(x)
        jax.block_until_ready((relu6, layers_in, layers_out))

        lin1_r, lin2_r, relu_r, relu6_r = _ref(x)
        ok &= bool(jnp.allclose(layers_in[0], x))
        ok &= bool(jnp.allclose(layers_out[0], lin1_r, atol=1e-5))
        ok &= bool(jnp.allclose(layers_out[1], lin2_r, atol=1e-5))
        ok &= bool(jnp.allclose(layers_out[2], relu_r, atol=1e-5))
        ok &= bool(jnp.allclose(relu6, relu6_r, atol=1e-5))
        ok &= (relu6.shape == (B, 1)) and (layers_out[0].shape == (B, 2))

    assert ok
    print("KERNEL_OK")
</pallas_src>

<mosaic_0001>
module attributes {stable_mosaic.version = 11 : i64} {
  func.func @_hook_forward_kernel(%arg0: i32, %arg1: memref<2x8x128xf32, #tpu.memory_space<vmem>>, %arg2: memref<5x8x128xf32, #tpu.memory_space<vmem>>) attributes {dimension_semantics = [#tpu.dimension_semantics<parallel>], iteration_bounds = array<i64: 1>, scalar_prefetch = 0 : i64, scratch_operands = 0 : i64, tpu.core_type = #tpu.core_type<tc>, window_params = [{transform_indices = @transform_0, window_bounds = array<i64: 2, 8, 128>}, {transform_indices = @transform_1, window_bounds = array<i64: 5, 8, 128>}]} {
    %c0 = arith.constant 0 : index
    %c0_0 = arith.constant 0 : index
    %c0_1 = arith.constant 0 : index
    %0 = vector.load %arg1[%c0, %c0_0, %c0_1] : memref<2x8x128xf32, #tpu.memory_space<vmem>>, vector<1x8x128xf32>
    %1 = vector.shape_cast %0 : vector<1x8x128xf32> to vector<8x128xf32>
    %c1 = arith.constant 1 : index
    %c0_2 = arith.constant 0 : index
    %c0_3 = arith.constant 0 : index
    %2 = vector.load %arg1[%c1, %c0_2, %c0_3] : memref<2x8x128xf32, #tpu.memory_space<vmem>>, vector<1x8x128xf32>
    %3 = vector.shape_cast %2 : vector<1x8x128xf32> to vector<8x128xf32>
    %4 = arith.addf %1, %3 : vector<8x128xf32>
    %cst = arith.constant 1.000000e+00 : f32
    %5 = vector.broadcast %cst : f32 to vector<8x128xf32>
    %6 = arith.addf %4, %5 : vector<8x128xf32>
    %cst_4 = arith.constant 2.000000e+00 : f32
    %7 = vector.broadcast %cst_4 : f32 to vector<8x128xf32>
    %8 = arith.mulf %7, %4 : vector<8x128xf32>
    %cst_5 = arith.constant 3.000000e+00 : f32
    %9 = vector.broadcast %cst_5 : f32 to vector<8x128xf32>
    %10 = arith.addf %8, %9 : vector<8x128xf32>
    %cst_6 = arith.constant 0.000000e+00 : f32
    %11 = vector.broadcast %cst_6 : f32 to vector<8x128xf32>
    %12 = arith.maximumf %10, %11 : vector<8x128xf32>
    %cst_7 = arith.constant 6.000000e+00 : f32
    %13 = vector.broadcast %cst_7 : f32 to vector<8x128xf32>
    %14 = arith.minimumf %12, %13 : vector<8x128xf32>
    %c0_8 = arith.constant 0 : index
    %c0_9 = arith.constant 0 : index
    %c0_10 = arith.constant 0 : index
    %15 = vector.load %arg2[%c0_8, %c0_9, %c0_10] : memref<5x8x128xf32, #tpu.memory_space<vmem>>, vector<1x8x128xf32>
    %16 = vector.shape_cast %15 : vector<1x8x128xf32> to vector<8x128xf32>
    %17 = vector.shape_cast %6 : vector<8x128xf32> to vector<1x8x128xf32>
    tpu.vector_store %arg2[%c0_8, %c0_9, %c0_10], %17 {strides = array<i32>} : memref<5x8x128xf32, #tpu.memory_space<vmem>>, vector<1x8x128xf32>,
    %c1_11 = arith.constant 1 : index
    %c0_12 = arith.constant 0 : index
    %c0_13 = arith.constant 0 : index
    %18 = vector.load %arg2[%c1_11, %c0_12, %c0_13] : memref<5x8x128xf32, #tpu.memory_space<vmem>>, vector<1x8x128xf32>
    %19 = vector.shape_cast %18 : vector<1x8x128xf32> to vector<8x128xf32>
    %20 = vector.shape_cast %6 : vector<8x128xf32> to vector<1x8x128xf32>
    tpu.vector_store %arg2[%c1_11, %c0_12, %c0_13], %20 {strides = array<i32>} : memref<5x8x128xf32, #tpu.memory_space<vmem>>, vector<1x8x128xf32>,
    %c2 = arith.constant 2 : index
    %c0_14 = arith.constant 0 : index
    %c0_15 = arith.constant 0 : index
    %21 = vector.load %arg2[%c2, %c0_14, %c0_15] : memref<5x8x128xf32, #tpu.memory_space<vmem>>, vector<1x8x128xf32>
    %22 = vector.shape_cast %21 : vector<1x8x128xf32> to vector<8x128xf32>
    %23 = vector.shape_cast %10 : vector<8x128xf32> to vector<1x8x128xf32>
    tpu.vector_store %arg2[%c2, %c0_14, %c0_15], %23 {strides = array<i32>} : memref<5x8x128xf32, #tpu.memory_space<vmem>>, vector<1x8x128xf32>,
    %c3 = arith.constant 3 : index
    %c0_16 = arith.constant 0 : index
    %c0_17 = arith.constant 0 : index
    %24 = vector.load %arg2[%c3, %c0_16, %c0_17] : memref<5x8x128xf32, #tpu.memory_space<vmem>>, vector<1x8x128xf32>
    %25 = vector.shape_cast %24 : vector<1x8x128xf32> to vector<8x128xf32>
    %26 = vector.shape_cast %12 : vector<8x128xf32> to vector<1x8x128xf32>
    tpu.vector_store %arg2[%c3, %c0_16, %c0_17], %26 {strides = array<i32>} : memref<5x8x128xf32, #tpu.memory_space<vmem>>, vector<1x8x128xf32>,
    %c4 = arith.constant 4 : index
    %c0_18 = arith.constant 0 : index
    %c0_19 = arith.constant 0 : index
    %27 = vector.load %arg2[%c4, %c0_18, %c0_19] : memref<5x8x128xf32, #tpu.memory_space<vmem>>, vector<1x8x128xf32>
    %28 = vector.shape_cast %27 : vector<1x8x128xf32> to vector<8x128xf32>
    %29 = vector.shape_cast %14 : vector<8x128xf32> to vector<1x8x128xf32>
    tpu.vector_store %arg2[%c4, %c0_18, %c0_19], %29 {strides = array<i32>} : memref<5x8x128xf32, #tpu.memory_space<vmem>>, vector<1x8x128xf32>,
    return
  }
  func.func @transform_0(%arg0: i32) -> (i32, i32, i32) {
    %c0_i32 = arith.constant 0 : i32
    %c0_i32_0 = arith.constant 0 : i32
    %c0_i32_1 = arith.constant 0 : i32
    return %c0_i32, %c0_i32_0, %arg0 : i32, i32, i32
  }
  func.func @transform_1(%arg0: i32) -> (i32, i32, i32) {
    %c0_i32 = arith.constant 0 : i32
    %c0_i32_0 = arith.constant 0 : i32
    %c0_i32_1 = arith.constant 0 : i32
    return %c0_i32, %c0_i32_0, %arg0 : i32, i32, i32
  }
}

</mosaic_0001>

<llo_original>
// kernel: tpu_custom_call.1
$region0: #{tpu_custom_call.1}
  #allocation0 [shape = 'u32[]', space=smem, size = 0x4, offset = 0x4, fixed_abs, tag = 'smem constant byte address 0x4 - core index']
  #allocation1 [shape = 'u32[144,128]{1,0:T(1,128)}', space=vmem, size = 0x12000, scoped, tag = 'internal scratch']
  %s0 = inlined_call_operand.hbm [shape: f32[2,8,128], index: 0, kind: input, shape index: {}]
  %s1 = inlined_call_operand.hbm [shape: f32[5,8,128], index: 1, kind: output, shape index: {}]
  %s2 = sld [smem:[#allocation0]]
  $region18: #{tpu_custom_call.1} parent=0
    _
  %s4 = ssub.s32 1, %s2
  %s5 = scalar_select 0, %s4, %s2
  $region1: #{tpu_custom_call.1} parent=0
    #allocation2 [shape = 'u8[8192]{0}', space=vmem, size = 0x2000, scoped, tag = 'input window, operand 0, single buffered']
    #allocation3 [shape = 's32[1]{0}', space=sflag, size = 0x4, scoped, tag = 'scoped memory for tpu_custom_call.1']
    #allocation4 [shape = 's32[1]{0}', space=sflag, size = 0x4, scoped, tag = 'scoped memory for tpu_custom_call.1']
    #allocation5 [shape = 'u8[20480]{0}', space=vmem, size = 0x5000, scoped, tag = 'output window, operand 0, single buffered']
    %6 = vsyncpa [#allocation3], 0
    %7 = vsyncpa [#allocation4], 0
    // Predicated region
    $region2: #{tpu_custom_call.1} parent=1 // pred_check
      _
    $region3: #{tpu_custom_call.1} parent=1 // pred_check_branch
      %9 = sbr.rel (0) target = $region5
    $region4: #{tpu_custom_call.1} parent=1 // pred_region
      %s11 = ssub.s32 256, 256
      %12 = vsyncadd [#allocation3], %s11
      %s13 = sshll.u32 [#allocation2], 4
      %s14 = int_to_ptr.vmem [resolvable:$true] %s13
      %19 = dma.hbm_to_vmem [thread:$0]  %s0, 256, %s14, [#allocation3], 128, 128, 8
    $region5: #{tpu_custom_call.1} parent=1 // pred_fallthru
      _
    // Predicated region
    $region6: #{tpu_custom_call.1} parent=1 // pred_check
      _
    $region7: #{tpu_custom_call.1} parent=1 // pred_check_branch
      %21 = sbr.rel (0) target = $region9
    $region8: #{tpu_custom_call.1} parent=1 // pred_region
      %22 = dma.done [#allocation3], 256
    $region9: #{tpu_custom_call.1} parent=1 // pred_fallthru
      _
    %v23 = vld [vmem:[#allocation2] sm:$0xff]
    %s24 = scalar_lea.vmem [#allocation2], 8
    %v25 = vld [vmem:[%s24] sm:$0xff]
    %v26 = vadd.f32 %v23, %v25
    %v27 = vadd.f32 %v26, 1.0
    %v28 = vmul.f32 %v26, 2.0
    %v29 = vadd.f32 %v28, 3.0
    %v30 = vmax.f32 %v29, 0.0
    %v31 = vmin.f32 %v30, 6.0
    %32 = vst [vmem:[#allocation5] sm:$0xff] %v27
    %s33 = scalar_lea.vmem [#allocation5], 8
    %34 = vst [vmem:[%s33] sm:$0xff] %v27
    %s35 = scalar_lea.vmem [#allocation5], 16
    %36 = vst [vmem:[%s35] sm:$0xff] %v29
    %s37 = scalar_lea.vmem [#allocation5], 24
    %38 = vst [vmem:[%s37] sm:$0xff] %v30
    %s39 = scalar_lea.vmem [#allocation5], 32
    %40 = vst [vmem:[%s39] sm:$0xff] %v31
    // Predicated region
    $region10: #{tpu_custom_call.1} parent=1 // pred_check
      _
    $region11: #{tpu_custom_call.1} parent=1 // pred_check_branch
      %42 = sbr.rel (0) target = $region13
    $region12: #{tpu_custom_call.1} parent=1 // pred_region
      %s44 = ssub.s32 640, 640
      %45 = vsyncadd [#allocation4], %s44
      %s46 = sshll.u32 [#allocation5], 4
      %s47 = int_to_ptr.vmem [resolvable:$true] %s46
      %52 = dma.vmem_to_hbm [thread:$0]  %s47, 640, %s1, [#allocation4], 128, 128, 8
    $region13: #{tpu_custom_call.1} parent=1 // pred_fallthru
      _
    // Predicated region
    $region14: #{tpu_custom_call.1} parent=1 // pred_check
      _
    $region15: #{tpu_custom_call.1} parent=1 // pred_check_branch
      %54 = sbr.rel (0) target = $region17
    $region16: #{tpu_custom_call.1} parent=1 // pred_region
      %55 = dma.done [#allocation4], 640
    $region17: #{tpu_custom_call.1} parent=1 // pred_fallthru
      _
    %56 = vsyncpa [#allocation3], 1
    %57 = vsyncpa [#allocation4], 1

</llo_original>
